<compile_context>
chip_gen: v5e
topology: v5e:2x2
jax: 0.10.0
libtpu: 0.0.40
codegen_flags: <defaults>
</compile_context>

<pallas_src>
import jax
import jax.numpy as jnp
from jax.experimental import pallas as pl
from jax.experimental.pallas import tpu as pltpu


def _round_up(x, m):
    return ((x + m - 1) // m) * m


def _conv_stats_kernel(a_ref, w_ref, y_ref, stats_ref, acc_ref):
    """One (group, image, pos-tile, K-tile) step: bf16 matmul accumulated in
    an f32 VMEM scratch; on the last K step: bf16 y writeback + per-tile
    per-channel BN partial stats (row 0 = sum, row 1 = sum of squares)."""
    @pl.when(pl.program_id(3) == 0)
    def _():
        acc_ref[...] = jnp.zeros_like(acc_ref)

    acc_ref[...] += jnp.dot(a_ref[...], w_ref[...],
                            preferred_element_type=jnp.float32)

    @pl.when(pl.program_id(3) == pl.num_programs(3) - 1)
    def _():
        acc = acc_ref[...]
        y_ref[...] = acc.astype(y_ref.dtype)
        stats_ref[0:1, :] = jnp.sum(acc, axis=0, keepdims=True)
        stats_ref[1:2, :] = jnp.sum(acc * acc, axis=0, keepdims=True)
        # rows 2..7 of the stats block are intentionally left unwritten.


def _bn_apply_kernel(y_ref, scale_ref, shift_ref, o_ref):
    """Affine BN apply + in-kernel transpose: output tile is
    [channels (sublanes), positions (lanes)] -> lane-dense, NCHW-ready."""
    cg = o_ref.shape[0]                                   # real Cout_g
    z = y_ref[...].astype(jnp.float32) * scale_ref[...] + shift_ref[...]
    lane = _round_up(z.shape[1], 128)
    if lane != z.shape[1]:
        # Pad lanes so the XLU transpose stays on a 128-aligned shape; only
        # the real channels were scaled/shifted above.
        z = jnp.concatenate(
            [z, jnp.zeros((z.shape[0], lane - z.shape[1]), jnp.float32)],
            axis=1)
    o_ref[...] = z.T[:cg, :]


def single_path_forward(x, conv_w, gamma, beta, *, stride, padding, groups,
                        eps=1e-5, tile_m=512, tk_max=1024,
                        compute_dtype=jnp.bfloat16):
    """Forward of SinglePath: Conv2d(bias=False, groups) -> BatchNorm2d
    (training-mode batch statistics, biased variance).

    x:      [B, Cin, H, W]   (NCHW, like PyTorch)
    conv_w: [Cout, Cin//groups, kh, kw]
    gamma, beta: [Cout]
    returns [B, Cout, OH, OW] float32
    """
    B, Cin, H, W = x.shape
    Cout, Cin_g, kh, kw = conv_w.shape
    assert Cin_g == Cin // groups and Cout % groups == 0
    Cout_g = Cout // groups
    OH = (H + 2 * padding - kh) // stride + 1
    OW = (W + 2 * padding - kw) // stride + 1

    P = OH * OW                                 # positions per image
    K = kh * kw * Cin_g                         # reduction length
    M = B * P                                   # BN sample count

    # Position tile: lanes of the pass-2 output, sublanes of the pass-1 A tile.
    tp = min(_round_up(tile_m, 128), _round_up(P, 128))
    P_pad = _round_up(P, tp)
    n_pt = P_pad // tp

    # K tile: full K for moderate K (no HBM K-padding at all), else 512-wide
    # tiles on an innermost "arbitrary" grid axis.
    if K <= tk_max:
        tk, K_pad = K, K
    else:
        tk = 512
        K_pad = _round_up(K, tk)
    n_kt = K_pad // tk

    vmem_limit = 48 * 1024 * 1024               # headroom on v7x's 64 MiB

    # ---- glue: NHWC + im2col, K ordered (ki, kj, ci), per (group, image) ----
    x_nhwc = jnp.transpose(x, (0, 2, 3, 1)).astype(compute_dtype)
    x_p = jnp.pad(x_nhwc, ((0, 0), (padding, padding), (padding, padding), (0, 0)))
    a_groups = []
    for g in range(groups):
        xg = x_p[..., g * Cin_g:(g + 1) * Cin_g]
        cols = []
        for ki in range(kh):
            for kj in range(kw):
                cols.append(xg[:, ki:ki + stride * OH:stride,
                               kj:kj + stride * OW:stride, :])
        a = jnp.concatenate(cols, axis=-1).reshape(B, P, K)
        # Zero padding is exact: padded P rows contribute 0 to BN sums,
        # padded K columns meet zero weight rows.
        a_groups.append(jnp.pad(a, ((0, 0), (0, P_pad - P), (0, K_pad - K))))
    A = jnp.stack(a_groups, axis=0)             # [G, B, P_pad, K_pad] bf16

    w_mat = conv_w.reshape(groups, Cout_g, Cin_g, kh, kw)
    w_mat = jnp.transpose(w_mat, (0, 3, 4, 2, 1)).reshape(groups, K, Cout_g)
    w_mat = jnp.pad(w_mat, ((0, 0), (0, K_pad - K), (0, 0)))
    w_mat = w_mat.astype(compute_dtype)         # [G, K_pad, Cout_g]

    # ---- Pallas pass 1: conv-as-matmul + BN batch-stat partials ------------
    flops = 2 * groups * B * P_pad * K_pad * Cout_g
    bytes_accessed = (A.size * A.dtype.itemsize
                      + w_mat.size * w_mat.dtype.itemsize
                      + groups * B * P_pad * Cout_g * 2        # y (bf16)
                      + groups * B * n_pt * 8 * Cout_g * 4)    # stats (f32)
    y, stats = pl.pallas_call(
        _conv_stats_kernel,
        out_shape=(
            jax.ShapeDtypeStruct((groups, B, P_pad, Cout_g), jnp.bfloat16),
            jax.ShapeDtypeStruct((groups, B, n_pt * 8, Cout_g), jnp.float32),
        ),
        grid_spec=pltpu.PrefetchScalarGridSpec(
            num_scalar_prefetch=0,
            grid=(groups, B, n_pt, n_kt),
            in_specs=[
                pl.BlockSpec((None, None, tp, tk), lambda g, b, p, k: (g, b, p, k)),
                pl.BlockSpec((None, tk, Cout_g), lambda g, b, p, k: (g, k, 0)),
            ],
            out_specs=(
                pl.BlockSpec((None, None, tp, Cout_g), lambda g, b, p, k: (g, b, p, 0)),
                pl.BlockSpec((None, None, 8, Cout_g), lambda g, b, p, k: (g, b, p, 0)),
            ),
            scratch_shapes=[pltpu.VMEM((tp, Cout_g), jnp.float32)],
        ),
        compiler_params=pltpu.CompilerParams(
            dimension_semantics=("parallel", "parallel", "parallel", "arbitrary"),
            vmem_limit_bytes=vmem_limit),
        cost_estimate=pl.CostEstimate(flops=flops, transcendentals=0,
                                      bytes_accessed=bytes_accessed),
    )(A, w_mat)

    # ---- BN batch statistics (training-mode, biased variance), f32 ---------
    st = stats.reshape(groups, B, n_pt, 8, Cout_g)
    s = jnp.sum(st[:, :, :, 0, :], axis=(1, 2))     # [G, Cout_g]
    ss = jnp.sum(st[:, :, :, 1, :], axis=(1, 2))    # [G, Cout_g]
    mean = s / M
    # TODO(synk): E[x^2]-E[x]^2 can cancel for very large M / large-mean
    # channels; a centered two-pass reduction would tighten parity further.
    var = jnp.maximum(ss / M - mean * mean, 0.0)

    gamma_g = gamma.astype(jnp.float32).reshape(groups, Cout_g)
    beta_g = beta.astype(jnp.float32).reshape(groups, Cout_g)
    scale = gamma_g * jax.lax.rsqrt(var + eps)
    shift = beta_g - mean * scale
    scale = scale.reshape(groups, 1, Cout_g)
    shift = shift.reshape(groups, 1, Cout_g)

    # ---- Pallas pass 2: y*scale + shift, emitted as (B, G, C, P) NCHW-ready -
    out_t = pl.pallas_call(
        _bn_apply_kernel,
        out_shape=jax.ShapeDtypeStruct((B, groups, Cout_g, P_pad), jnp.float32),
        grid_spec=pltpu.PrefetchScalarGridSpec(
            num_scalar_prefetch=0,
            grid=(groups, B, n_pt),
            in_specs=[
                pl.BlockSpec((None, None, tp, Cout_g), lambda g, b, p: (g, b, p, 0)),
                pl.BlockSpec((None, 1, Cout_g), lambda g, b, p: (g, 0, 0)),
                pl.BlockSpec((None, 1, Cout_g), lambda g, b, p: (g, 0, 0)),
            ],
            out_specs=pl.BlockSpec((None, None, Cout_g, tp),
                                   lambda g, b, p: (b, g, 0, p)),
        ),
        compiler_params=pltpu.CompilerParams(
            dimension_semantics=("parallel", "parallel", "parallel"),
            vmem_limit_bytes=vmem_limit),
    )(y, scale, shift)

    # Pure reshape (plus a position-slice if P was padded); no transpose.
    out = out_t[:, :, :, :P].reshape(B, Cout, OH, OW)
    return out


def _reference(x, conv_w, gamma, beta, *, stride, padding, groups, eps=1e-5):
    """Pure-JAX reference: Conv2d(bias=False) + BatchNorm2d (training-mode,
    biased variance).  Conv inputs cast to bf16 with f32 accumulation to
    mirror the kernel's MXU precision."""
    conv = jax.lax.conv_general_dilated(
        x.astype(jnp.bfloat16), conv_w.astype(jnp.bfloat16),
        window_strides=(stride, stride),
        padding=((padding, padding), (padding, padding)),
        dimension_numbers=("NCHW", "OIHW", "NCHW"),
        feature_group_count=groups,
        preferred_element_type=jnp.float32)
    mean = conv.mean(axis=(0, 2, 3), keepdims=True)
    var = ((conv - mean) ** 2).mean(axis=(0, 2, 3), keepdims=True)  # biased
    g = gamma.reshape(1, -1, 1, 1)
    b = beta.reshape(1, -1, 1, 1)
    return g * (conv - mean) / jnp.sqrt(var + eps) + b


def _run_case(key, B, Cin, H, W, Cout, ksize, stride, padding, groups):
    k1, k2 = jax.random.split(key)
    x = jax.random.normal(k1, (B, Cin, H, W), dtype=jnp.float32)
    conv_w = 0.1 * jax.random.normal(
        k2, (Cout, Cin // groups, ksize, ksize), dtype=jnp.float32)
    gamma = 1.0 + 0.05 * jnp.arange(Cout, dtype=jnp.float32)
    beta = 0.02 * jnp.arange(Cout, dtype=jnp.float32)

    out = single_path_forward(x, conv_w, gamma, beta,
                              stride=stride, padding=padding, groups=groups)
    out = jax.block_until_ready(out)

    ref = _reference(x, conv_w, gamma, beta,
                     stride=stride, padding=padding, groups=groups)
    OH = (H + 2 * padding - ksize) // stride + 1
    OW = (W + 2 * padding - ksize) // stride + 1
    assert out.shape == ref.shape == (B, Cout, OH, OW)
    # Tolerance reflects the (intentional) bf16 storage of the conv output
    # between the two Pallas passes; BN stats are accumulated in f32.
    max_err = float(jnp.max(jnp.abs(out - ref)))
    assert jnp.allclose(out, ref, atol=1e-2, rtol=1e-2), max_err


if __name__ == "__main__":
    key = jax.random.PRNGKey(0)
    k_a, k_b = jax.random.split(key)

    # Case 1: plain 3x3, stride 1, groups=1 (matches the suggested small shapes)
    _run_case(k_a, B=2, Cin=4, H=16, W=16, Cout=8,
              ksize=3, stride=1, padding=1, groups=1)

    # Case 2: grouped 3x3, stride 2 (exercises groups>1 and padded positions)
    _run_case(k_b, B=2, Cin=8, H=16, W=16, Cout=16,
              ksize=3, stride=2, padding=1, groups=2)

    print("KERNEL_OK")
</pallas_src>

<mosaic_0001>
module attributes {stable_mosaic.version = 11 : i64} {
  func.func @_conv_stats_kernel(%arg0: i32, %arg1: i32, %arg2: i32, %arg3: i32, %arg4: memref<1x1x256x36xbf16, #tpu.memory_space<vmem>>, %arg5: memref<1x36x8xbf16, #tpu.memory_space<vmem>>, %arg6: memref<1x1x256x8xbf16, #tpu.memory_space<vmem>>, %arg7: memref<1x1x8x8xf32, #tpu.memory_space<vmem>>, %arg8: memref<256x8xf32, #tpu.memory_space<vmem>>) attributes {dimension_semantics = [#tpu.dimension_semantics<parallel>, #tpu.dimension_semantics<parallel>, #tpu.dimension_semantics<parallel>, #tpu.dimension_semantics<arbitrary>], iteration_bounds = array<i64: 1, 2, 1, 1>, scalar_prefetch = 0 : i64, scratch_operands = 1 : i64, tpu.core_type = #tpu.core_type<tc>, window_params = [{transform_indices = @transform_0, window_bounds = array<i64: 1, 1, 256, 36>}, {transform_indices = @transform_1, window_bounds = array<i64: 1, 36, 8>}, {transform_indices = @transform_2, window_bounds = array<i64: 1, 1, 256, 8>}, {transform_indices = @transform_3, window_bounds = array<i64: 1, 1, 8, 8>}]} {
    %c0_i32 = arith.constant 0 : i32
    %0 = arith.cmpi eq, %arg3, %c0_i32 : i32
    %1 = arith.extui %0 : i1 to i32
    %c0_i32_0 = arith.constant 0 : i32
    %2 = arith.cmpi ne, %1, %c0_i32_0 : i32
    scf.if %2 {
      %cst_13 = arith.constant 0.000000e+00 : f32
      %14 = vector.broadcast %cst_13 : f32 to vector<256x8xf32>
      %c0_14 = arith.constant 0 : index
      %c0_15 = arith.constant 0 : index
      %15 = vector.load %arg8[%c0_14, %c0_15] : memref<256x8xf32, #tpu.memory_space<vmem>>, vector<256x8xf32>
      tpu.vector_store %arg8[%c0_14, %c0_15], %14 {strides = array<i32>} : memref<256x8xf32, #tpu.memory_space<vmem>>, vector<256x8xf32>,
    } else {
    }
    %c0 = arith.constant 0 : index
    %c0_1 = arith.constant 0 : index
    %3 = vector.load %arg8[%c0, %c0_1] : memref<256x8xf32, #tpu.memory_space<vmem>>, vector<256x8xf32>
    %c0_2 = arith.constant 0 : index
    %c0_3 = arith.constant 0 : index
    %c0_4 = arith.constant 0 : index
    %c0_5 = arith.constant 0 : index
    %4 = vector.load %arg4[%c0_2, %c0_3, %c0_4, %c0_5] : memref<1x1x256x36xbf16, #tpu.memory_space<vmem>>, vector<1x1x256x36xbf16>
    %5 = vector.shape_cast %4 : vector<1x1x256x36xbf16> to vector<256x36xbf16>
    %c0_6 = arith.constant 0 : index
    %c0_7 = arith.constant 0 : index
    %c0_8 = arith.constant 0 : index
    %6 = vector.load %arg5[%c0_6, %c0_7, %c0_8] : memref<1x36x8xbf16, #tpu.memory_space<vmem>>, vector<1x36x8xbf16>
    %7 = vector.shape_cast %6 : vector<1x36x8xbf16> to vector<36x8xbf16>
    %cst = arith.constant dense<0.000000e+00> : vector<256x8xf32>
    %8 = tpu.matmul %5, %7, %cst {dimension_numbers = #tpu.dot_dimension_numbers<[1], [0], [0], [1], [0, 0, 1, 1], [], []>} : vector<256x36xbf16>, vector<36x8xbf16>, vector<256x8xf32> -> vector<256x8xf32>
    %9 = arith.addf %3, %8 : vector<256x8xf32>
    %c0_9 = arith.constant 0 : index
    %c0_10 = arith.constant 0 : index
    %10 = vector.load %arg8[%c0_9, %c0_10] : memref<256x8xf32, #tpu.memory_space<vmem>>, vector<256x8xf32>
    tpu.vector_store %arg8[%c0_9, %c0_10], %9 {strides = array<i32>} : memref<256x8xf32, #tpu.memory_space<vmem>>, vector<256x8xf32>,
    %c0_i32_11 = arith.constant 0 : i32
    %11 = arith.cmpi eq, %arg3, %c0_i32_11 : i32
    %12 = arith.extui %11 : i1 to i32
    %c0_i32_12 = arith.constant 0 : i32
    %13 = arith.cmpi ne, %12, %c0_i32_12 : i32
    scf.if %13 {
      %c0_13 = arith.constant 0 : index
      %c0_14 = arith.constant 0 : index
      %14 = vector.load %arg8[%c0_13, %c0_14] : memref<256x8xf32, #tpu.memory_space<vmem>>, vector<256x8xf32>
      %15 = arith.truncf %14 : vector<256x8xf32> to vector<256x8xbf16>
      %c0_15 = arith.constant 0 : index
      %c0_16 = arith.constant 0 : index
      %c0_17 = arith.constant 0 : index
      %c0_18 = arith.constant 0 : index
      %16 = vector.load %arg6[%c0_15, %c0_16, %c0_17, %c0_18] : memref<1x1x256x8xbf16, #tpu.memory_space<vmem>>, vector<1x1x256x8xbf16>
      %17 = vector.shape_cast %16 : vector<1x1x256x8xbf16> to vector<256x8xbf16>
      %18 = vector.shape_cast %15 : vector<256x8xbf16> to vector<1x1x256x8xbf16>
      tpu.vector_store %arg6[%c0_15, %c0_16, %c0_17, %c0_18], %18 {strides = array<i32>} : memref<1x1x256x8xbf16, #tpu.memory_space<vmem>>, vector<1x1x256x8xbf16>,
      %cst_19 = arith.constant dense<0.000000e+00> : vector<8xf32>
      %19 = vector.multi_reduction <add>, %14, %cst_19 [0] : vector<256x8xf32> to vector<8xf32>
      %20 = vector.shape_cast %19 : vector<8xf32> to vector<1x8xf32>
      %c0_20 = arith.constant 0 : index
      %c0_21 = arith.constant 0 : index
      %c0_22 = arith.constant 0 : index
      %c0_23 = arith.constant 0 : index
      %21 = vector.load %arg7[%c0_20, %c0_21, %c0_22, %c0_23] : memref<1x1x8x8xf32, #tpu.memory_space<vmem>>, vector<1x1x1x8xf32>
      %22 = vector.shape_cast %21 : vector<1x1x1x8xf32> to vector<1x8xf32>
      %23 = vector.shape_cast %20 : vector<1x8xf32> to vector<1x1x1x8xf32>
      tpu.vector_store %arg7[%c0_20, %c0_21, %c0_22, %c0_23], %23 {strides = array<i32>} : memref<1x1x8x8xf32, #tpu.memory_space<vmem>>, vector<1x1x1x8xf32>,
      %24 = arith.mulf %14, %14 : vector<256x8xf32>
      %cst_24 = arith.constant dense<0.000000e+00> : vector<8xf32>
      %25 = vector.multi_reduction <add>, %24, %cst_24 [0] : vector<256x8xf32> to vector<8xf32>
      %26 = vector.shape_cast %25 : vector<8xf32> to vector<1x8xf32>
      %c0_25 = arith.constant 0 : index
      %c0_26 = arith.constant 0 : index
      %c1 = arith.constant 1 : index
      %c0_27 = arith.constant 0 : index
      %27 = vector.load %arg7[%c0_25, %c0_26, %c1, %c0_27] : memref<1x1x8x8xf32, #tpu.memory_space<vmem>>, vector<1x1x1x8xf32>
      %28 = vector.shape_cast %27 : vector<1x1x1x8xf32> to vector<1x8xf32>
      %29 = vector.shape_cast %26 : vector<1x8xf32> to vector<1x1x1x8xf32>
      tpu.vector_store %arg7[%c0_25, %c0_26, %c1, %c0_27], %29 {strides = array<i32>} : memref<1x1x8x8xf32, #tpu.memory_space<vmem>>, vector<1x1x1x8xf32>,
    } else {
    }
    return
  }
  func.func @transform_0(%arg0: i32, %arg1: i32, %arg2: i32, %arg3: i32) -> (i32, i32, i32, i32) {
    %c0_i32 = arith.constant 0 : i32
    return %arg0, %arg1, %arg2, %arg3 : i32, i32, i32, i32
  }
  func.func @transform_1(%arg0: i32, %arg1: i32, %arg2: i32, %arg3: i32) -> (i32, i32, i32) {
    %c0_i32 = arith.constant 0 : i32
    %c0_i32_0 = arith.constant 0 : i32
    return %arg0, %arg3, %c0_i32 : i32, i32, i32
  }
  func.func @transform_2(%arg0: i32, %arg1: i32, %arg2: i32, %arg3: i32) -> (i32, i32, i32, i32) {
    %c0_i32 = arith.constant 0 : i32
    %c0_i32_0 = arith.constant 0 : i32
    return %arg0, %arg1, %arg2, %c0_i32 : i32, i32, i32, i32
  }
  func.func @transform_3(%arg0: i32, %arg1: i32, %arg2: i32, %arg3: i32) -> (i32, i32, i32, i32) {
    %c0_i32 = arith.constant 0 : i32
    %c0_i32_0 = arith.constant 0 : i32
    return %arg0, %arg1, %arg2, %c0_i32 : i32, i32, i32, i32
  }
}

</mosaic_0001>

<llo_original>
// kernel: tpu_custom_call.1
$region0: #{tpu_custom_call.1}
  #allocation0 [shape = 'u32[]', space=smem, size = 0x4, offset = 0x4, fixed_abs, tag = 'smem constant byte address 0x4 - core index']
  #allocation1 [shape = 'u32[72,128]{1,0:T(1,128)}', space=vmem, size = 0x9000, scoped, tag = 'internal scratch']
  #allocation2 [shape = 'f32[256,8]{1,0:T(8,128)}', space=vmem, size = 0x20000, scoped, tag = 'scratch operand']
  %s0 = inlined_call_operand.vmem [shape: bf16[1,2,256,36], index: 0, kind: input, shape index: {}]
  %s1 = inlined_call_operand.vmem [shape: bf16[1,36,8], index: 1, kind: input, shape index: {}]
  %s2 = inlined_call_operand.vmem [shape: bf16[1,2,256,8], index: 2, kind: output, shape index: {0}]
  %s3 = inlined_call_operand.hbm [shape: f32[1,2,8,8], index: 3, kind: output, shape index: {1}]
  %4 = xla_tuple %s2, %s3
  %s5 = sld [smem:[#allocation0]]
  $region57: #{tpu_custom_call.1} parent=0
    _
  %s7 = ssub.s32 1, %s5
  %s8 = scalar_select 0, %s7, %s5
  $region1: #{tpu_custom_call.1} parent=0
    #allocation3 [shape = 'u8[8192]{0}', space=vmem, size = 0x2000, scoped, tag = 'output window, operand 1']
    #allocation4 [shape = 's32[2]{0}', space=sflag, size = 0x8, scoped, tag = 'scoped memory for tpu_custom_call.1']
    %9 = vsyncpa [#allocation4], 0
    %s10 = scalar_lea.sflag [#allocation4], 1
    %11 = vsyncpa %s10, 0
    loop: start=0, step=1, limit=4
    $region2: #{tpu_custom_call.1} parent=1 // loop_pre_header
      _
    $region3: #{tpu_custom_call.1} parent=1 // loop_header
      %s13 = sphi 0, %s17
      %p14 = scmp.ge.s32.totalorder %s13, 4
      %s20 = sphi 0, %s46
      %s21 = sphi 0, %s42
      %s22 = sphi 0, %s38
      %s23 = sphi 0, %s34
      %s24 = sphi 0, %s20
      %s25 = sphi 0, %s21
      %s26 = sphi 0, %s22
      %s27 = sphi 0, %s23
      %s28 = sphi 0, %s24
      %s29 = sphi 0, %s25
      %s30 = sphi 0, %s26
      %s31 = sphi 0, %s27
      %s55 = sphi 0, %s57
      %s58 = sphi 0, %s55
      %s59 = sphi 0, %s58
      %s75 = sphi 0, %s59
      %s83 = sphi 0, %s85
      %s86 = sphi 0, %s83
      %s87 = sphi 0, %s86
      %s103 = sphi 0, %s87
      %s113 = sphi 0, %s115
      %s116 = sphi 0, %s113
      %s117 = sphi 0, %s116
      %s133 = sphi 0, %s117
      %s143 = sphi 0, %s145
      %s146 = sphi 0, %s143
      %s147 = sphi 0, %s146
      %s163 = sphi 0, %s147
    $region4: #{tpu_custom_call.1} parent=1 // loop_header_branch
      %16 = sbr.rel (%p14) target = $region8
    $region5: #{tpu_custom_call.1} parent=1 // loop_body
      %s18 = ssub.s32 %s13, 1
      %s19 = ssub.s32 %s13, 2
      %s32 = sadd.s32 1, %s23
      %p33 = scmp.ge.s32.totalorder %s32, 1
      %s34 = scalar_select %p33, 0, %s32
      %s35 = sadd.s32 1, %s22
      %s36 = scalar_select %p33, %s35, %s22
      %p37 = scmp.ge.s32.totalorder %s36, 1
      %s38 = scalar_select %p37, 0, %s36
      %s39 = sadd.s32 1, %s21
      %s40 = scalar_select %p37, %s39, %s21
      %p41 = scmp.ge.s32.totalorder %s40, 2
      %s42 = scalar_select %p41, 0, %s40
      %s43 = sadd.s32 1, %s20
      %s44 = scalar_select %p41, %s43, %s20
      %p45 = scmp.ge.s32.totalorder %s44, 1
      %s46 = scalar_select %p45, 0, %s44
      %s47 = ssub.s32 %s20, %s46
      %s48 = ssub.s32 %s21, %s42
      %s49 = sor.u32 %s47, %s48
      %s50 = ssub.s32 %s22, %s38
      %s51 = sor.u32 %s49, %s50
      %s52 = ssub.s32 %s23, %s34
      %s53 = sor.u32 %s51, %s52
      %p54 = scmp.eq.s32.totalorder %s53, 0
      %s56 = sadd.s32 %s55, 1
      %s57 = scalar_select %p54, %s55, %s56
      %p60 = pneg %p54
      %p61 = scmp.eq.s32.totalorder %s13, 1
      %p62 = por %p60, %p61
      %p63 = scmp.ne.s32.totalorder %s55, %s58
      %p64 = scmp.eq.s32.totalorder %s13, 0
      %p65 = por %p63, %p64
      %p66 = scmp.ne.s32.totalorder %s55, %s58
      %p67 = scmp.eq.s32.totalorder %s18, 1
      %p68 = por %p66, %p67
      %p69 = scmp.ne.s32.totalorder %s58, %s59
      %p70 = scmp.eq.s32.totalorder %s18, 0
      %p71 = por %p69, %p70
      %p72 = scmp.ne.s32.totalorder %s58, %s59
      %p73 = scmp.eq.s32.totalorder %s19, 1
      %p74 = por %p72, %p73
      %p76 = scmp.ne.s32.totalorder %s59, %s75
      %p77 = scmp.eq.s32.totalorder %s19, 0
      %p78 = por %p76, %p77
      %s79 = ssub.s32 %s20, %s46
      %s80 = ssub.s32 %s23, %s34
      %s81 = sor.u32 %s79, %s80
      %p82 = scmp.eq.s32.totalorder %s81, 0
      %s84 = sadd.s32 %s83, 1
      %s85 = scalar_select %p82, %s83, %s84
      %p88 = pneg %p82
      %p89 = scmp.eq.s32.totalorder %s13, 1
      %p90 = por %p88, %p89
      %p91 = scmp.ne.s32.totalorder %s83, %s86
      %p92 = scmp.eq.s32.totalorder %s13, 0
      %p93 = por %p91, %p92
      %p94 = scmp.ne.s32.totalorder %s83, %s86
      %p95 = scmp.eq.s32.totalorder %s18, 1
      %p96 = por %p94, %p95
      %p97 = scmp.ne.s32.totalorder %s86, %s87
      %p98 = scmp.eq.s32.totalorder %s18, 0
      %p99 = por %p97, %p98
      %p100 = scmp.ne.s32.totalorder %s86, %s87
      %p101 = scmp.eq.s32.totalorder %s19, 1
      %p102 = por %p100, %p101
      %p104 = scmp.ne.s32.totalorder %s87, %s103
      %p105 = scmp.eq.s32.totalorder %s19, 0
      %p106 = por %p104, %p105
      %s107 = ssub.s32 %s20, %s46
      %s108 = ssub.s32 %s21, %s42
      %s109 = sor.u32 %s107, %s108
      %s110 = ssub.s32 %s22, %s38
      %s111 = sor.u32 %s109, %s110
      %p112 = scmp.eq.s32.totalorder %s111, 0
      %s114 = sadd.s32 %s113, 1
      %s115 = scalar_select %p112, %s113, %s114
      %p118 = pneg %p112
      %p119 = scmp.eq.s32.totalorder %s13, 1
      %p120 = por %p118, %p119
      %p121 = scmp.ne.s32.totalorder %s113, %s116
      %p122 = scmp.eq.s32.totalorder %s13, 0
      %p123 = por %p121, %p122
      %p124 = scmp.ne.s32.totalorder %s113, %s116
      %p125 = scmp.eq.s32.totalorder %s18, 1
      %p126 = por %p124, %p125
      %p127 = scmp.ne.s32.totalorder %s116, %s117
      %p128 = scmp.eq.s32.totalorder %s18, 0
      %p129 = por %p127, %p128
      %p130 = scmp.ne.s32.totalorder %s116, %s117
      %p131 = scmp.eq.s32.totalorder %s19, 1
      %p132 = por %p130, %p131
      %p134 = scmp.ne.s32.totalorder %s117, %s133
      %p135 = scmp.eq.s32.totalorder %s19, 0
      %p136 = por %p134, %p135
      %s137 = ssub.s32 %s20, %s46
      %s138 = ssub.s32 %s21, %s42
      %s139 = sor.u32 %s137, %s138
      %s140 = ssub.s32 %s22, %s38
      %s141 = sor.u32 %s139, %s140
      %p142 = scmp.eq.s32.totalorder %s141, 0
      %s144 = sadd.s32 %s143, 1
      %s145 = scalar_select %p142, %s143, %s144
      %p148 = pneg %p142
      %p149 = scmp.eq.s32.totalorder %s13, 1
      %p150 = por %p148, %p149
      %p151 = scmp.ne.s32.totalorder %s143, %s146
      %p152 = scmp.eq.s32.totalorder %s13, 0
      %p153 = por %p151, %p152
      %p154 = scmp.ne.s32.totalorder %s143, %s146
      %p155 = scmp.eq.s32.totalorder %s18, 1
      %p156 = por %p154, %p155
      %p157 = scmp.ne.s32.totalorder %s146, %s147
      %p158 = scmp.eq.s32.totalorder %s18, 0
      %p159 = por %p157, %p158
      %p160 = scmp.ne.s32.totalorder %s146, %s147
      %p161 = scmp.eq.s32.totalorder %s19, 1
      %p162 = por %p160, %p161
      %p164 = scmp.ne.s32.totalorder %s147, %s163
      %p165 = scmp.eq.s32.totalorder %s19, 0
      %p166 = por %p164, %p165
      %p167 = scmp.le.s32.totalorder 1, %s13
      %p168 = scmp.lt.s32.totalorder %s13, 3
      %p169 = pnand %p167, %p168
      %p170 = pneg %p169
      // Predicated region
      $region9: #{tpu_custom_call.1} parent=5 // pred_check
        _
      $region10: #{tpu_custom_call.1} parent=5 // pred_check_branch
        %172 = sbr.rel (%p169) target = $region12
      $region11: #{tpu_custom_call.1} parent=5 // pred_region
        %s173 = ssub.s32 %s13, 1
        // Predicated region
        $region13: #{tpu_custom_call.1} parent=11 // pred_check
          %p174 = pneg %p99
        $region14: #{tpu_custom_call.1} parent=11 // pred_check_branch
          %176 = sbr.rel (%p174) target = $region16
        $region15: #{tpu_custom_call.1} parent=11 // pred_region
          %s177 = smul.u32 5, %s27
          %p178 = scmp.lt.s32.totalorder %s24, 0
          %s179 = scalar_select %p178, %s24, 0
          %p180 = scmp.lt.s32.totalorder %s177, 4
          %s181 = scalar_select %p180, %s177, 4
          %s182 = smul.addr %s179, 5
          %s183 = sadd.s32 %s181, %s182
          %s184 = smul.addr %s183, 4
          %s185 = scalar_lea.vmem %s1, %s184
          %s186 = smul.u32 5, %s27
        $region16: #{tpu_custom_call.1} parent=11 // pred_fallthru
          _
      $region12: #{tpu_custom_call.1} parent=5 // pred_fallthru
        _
      %p187 = scmp.lt.s32.totalorder %s13, 2
      // Predicated region
      $region17: #{tpu_custom_call.1} parent=5 // pred_check
        %p188 = pneg %p187
      $region18: #{tpu_custom_call.1} parent=5 // pred_check_branch
        %190 = sbr.rel (%p188) target = $region20
      $region19: #{tpu_custom_call.1} parent=5 // pred_region
        // Predicated region
        $region21: #{tpu_custom_call.1} parent=19 // pred_check
          %p191 = pneg %p65
        $region22: #{tpu_custom_call.1} parent=19 // pred_check_branch
          %193 = sbr.rel (%p191) target = $region24
        $region23: #{tpu_custom_call.1} parent=19 // pred_region
          %s194 = smul.u32 32, %s22
          %p195 = scmp.lt.s32.totalorder %s20, 0
          %s196 = scalar_select %p195, %s20, 0
          %p197 = scmp.lt.s32.totalorder %s21, 1
          %s198 = scalar_select %p197, %s21, 1
          %p199 = scmp.lt.s32.totalorder %s194, 31
          %s200 = scalar_select %p199, %s194, 31
          %p201 = scmp.lt.s32.totalorder %s23, 0
          %s202 = scalar_select %p201, %s23, 0
          %s203 = sadd.s32 %s202, %s200
          %s204 = smul.addr %s198, 32
          %s205 = sadd.s32 %s203, %s204
          %s206 = smul.addr %s196, 64
          %s207 = sadd.s32 %s205, %s206
          %s208 = smul.addr %s207, 4
          %s209 = scalar_lea.vmem %s0, %s208
          %s210 = smul.u32 32, %s22
        $region24: #{tpu_custom_call.1} parent=19 // pred_fallthru
          _
      $region20: #{tpu_custom_call.1} parent=5 // pred_fallthru
        _
      %p211 = scmp.le.s32.totalorder 1, %s13
      %p212 = scmp.lt.s32.totalorder %s13, 3
      %p213 = pnand %p211, %p212
      %p214 = pneg %p213
      // Predicated region
      $region25: #{tpu_custom_call.1} parent=5 // pred_check
        _
      $region26: #{tpu_custom_call.1} parent=5 // pred_check_branch
        %216 = sbr.rel (%p213) target = $region28
      $region27: #{tpu_custom_call.1} parent=5 // pred_region
        %s217 = ssub.s32 %s13, 1
        %s218 = smul.u32 32, %s26
        %p219 = scmp.lt.s32.totalorder %s24, 0
        %s220 = scalar_select %p219, %s24, 0
        %p221 = scmp.lt.s32.totalorder %s25, 1
        %s222 = scalar_select %p221, %s25, 1
        %p223 = scmp.lt.s32.totalorder %s218, 31
        %s224 = scalar_select %p223, %s218, 31
        %p225 = scmp.lt.s32.totalorder %s27, 0
        %s226 = scalar_select %p225, %s27, 0
        %s227 = sadd.s32 %s226, %s224
        %s228 = smul.addr %s222, 32
        %s229 = sadd.s32 %s227, %s228
        %s230 = smul.addr %s220, 64
        %s231 = sadd.s32 %s229, %s230
        %s232 = smul.addr %s231, 4
        %s233 = scalar_lea.vmem %s0, %s232
        %p234 = pneg %p71
        %p235 = pneg %p68
        %s236 = smul.u32 5, %s27
        %p237 = scmp.lt.s32.totalorder %s24, 0
        %s238 = scalar_select %p237, %s24, 0
        %p239 = scmp.lt.s32.totalorder %s236, 4
        %s240 = scalar_select %p239, %s236, 4
        %s241 = smul.addr %s238, 5
        %s242 = sadd.s32 %s240, %s241
        %s243 = smul.addr %s242, 4
        %s244 = scalar_lea.vmem %s1, %s243
        %p245 = pneg %p99
        %p246 = pneg %p96
        %p247 = pneg %p129
        %p248 = pneg %p126
        %s249 = smul.u32 32, %s26
        %p250 = scmp.lt.s32.totalorder %s24, 0
        %s251 = scalar_select %p250, %s24, 0
        %p252 = scmp.lt.s32.totalorder %s25, 1
        %s253 = scalar_select %p252, %s25, 1
        %p254 = scmp.lt.s32.totalorder %s249, 31
        %s255 = scalar_select %p254, %s249, 31
        %s256 = smul.addr %s253, 32
        %s257 = sadd.s32 %s255, %s256
        %s258 = smul.addr %s251, 64
        %s259 = sadd.s32 %s257, %s258
        %s260 = smul.addr %s259, 4
        %s261 = scalar_lea.vmem %s2, %s260
        %p262 = pneg %p159
        %p263 = pneg %p156
        %s264 = sand.u32 %s146, 1
        %s265 = scalar_lea.sflag [#allocation4], %s264
        %s266 = sand.u32 %s146, 1
        %s267 = smul.addr %s266, 8
        %s268 = scalar_lea.vmem [#allocation3], %s267
        %s269 = smul.u32 32, %s26
        %p270 = scmp.lt.s32.totalorder %s24, 0
        %s271 = scalar_select %p270, %s24, 0
        %p272 = scmp.lt.s32.totalorder %s25, 1
        %s273 = scalar_select %p272, %s25, 1
        %p274 = scmp.lt.s32.totalorder %s269, 31
        %s275 = scalar_select %p274, %s269, 31
        %p276 = scmp.lt.s32.totalorder %s27, 0
        %s277 = scalar_select %p276, %s27, 0
        %s278 = sadd.s32 %s277, %s275
        %s279 = smul.addr %s273, 32
        %s280 = sadd.s32 %s278, %s279
        %s281 = smul.addr %s271, 64
        %s282 = sadd.s32 %s280, %s281
        %s283 = smul.addr %s282, 4
        %s284 = scalar_lea.vmem %s0, %s283
        %s285 = smul.u32 32, %s26
        %s286 = smul.u32 5, %s27
        %p287 = scmp.lt.s32.totalorder %s24, 0
        %s288 = scalar_select %p287, %s24, 0
        %p289 = scmp.lt.s32.totalorder %s286, 4
        %s290 = scalar_select %p289, %s286, 4
        %s291 = smul.addr %s288, 5
        %s292 = sadd.s32 %s290, %s291
        %s293 = smul.addr %s292, 4
        %s294 = scalar_lea.vmem %s1, %s293
        %s295 = smul.u32 5, %s27
        %s296 = smul.u32 32, %s26
        %p297 = scmp.lt.s32.totalorder %s24, 0
        %s298 = scalar_select %p297, %s24, 0
        %p299 = scmp.lt.s32.totalorder %s25, 1
        %s300 = scalar_select %p299, %s25, 1
        %p301 = scmp.lt.s32.totalorder %s296, 31
        %s302 = scalar_select %p301, %s296, 31
        %s303 = smul.addr %s300, 32
        %s304 = sadd.s32 %s302, %s303
        %s305 = smul.addr %s298, 64
        %s306 = sadd.s32 %s304, %s305
        %s307 = smul.addr %s306, 4
        %s308 = scalar_lea.vmem %s2, %s307
        %s309 = smul.u32 32, %s26
        %p311 = scmp.eq.s32.totalorder %s27, 0
        // Predicated region
        $region29: #{tpu_custom_call.1} parent=27 // pred_check
          %p312 = pneg %p311
        $region30: #{tpu_custom_call.1} parent=27 // pred_check_branch
          %314 = sbr.rel (%p312) target = $region32
        $region31: #{tpu_custom_call.1} parent=27 // pred_region
          %vm315 = vcmask 64512
          %316 = vst.msk [vmem:[#allocation2] sm:$0xff] %vm315, 0.0
          %317 = vst.msk [vmem:[#allocation2 + $0x8] sm:$0xff] %vm315, 0.0
          %318 = vst.msk [vmem:[#allocation2 + $0x10] sm:$0xff] %vm315, 0.0
          %319 = vst.msk [vmem:[#allocation2 + $0x18] sm:$0xff] %vm315, 0.0
          %320 = vst.msk [vmem:[#allocation2 + $0x20] sm:$0xff] %vm315, 0.0
          %321 = vst.msk [vmem:[#allocation2 + $0x28] sm:$0xff] %vm315, 0.0
          %322 = vst.msk [vmem:[#allocation2 + $0x30] sm:$0xff] %vm315, 0.0
          %323 = vst.msk [vmem:[#allocation2 + $0x38] sm:$0xff] %vm315, 0.0
          %324 = vst.msk [vmem:[#allocation2 + $0x40] sm:$0xff] %vm315, 0.0
          %325 = vst.msk [vmem:[#allocation2 + $0x48] sm:$0xff] %vm315, 0.0
          %326 = vst.msk [vmem:[#allocation2 + $0x50] sm:$0xff] %vm315, 0.0
          %327 = vst.msk [vmem:[#allocation2 + $0x58] sm:$0xff] %vm315, 0.0
          %328 = vst.msk [vmem:[#allocation2 + $0x60] sm:$0xff] %vm315, 0.0
          %329 = vst.msk [vmem:[#allocation2 + $0x68] sm:$0xff] %vm315, 0.0
          %330 = vst.msk [vmem:[#allocation2 + $0x70] sm:$0xff] %vm315, 0.0
          %331 = vst.msk [vmem:[#allocation2 + $0x78] sm:$0xff] %vm315, 0.0
          %332 = vst.msk [vmem:[#allocation2 + $0x80] sm:$0xff] %vm315, 0.0
          %333 = vst.msk [vmem:[#allocation2 + $0x88] sm:$0xff] %vm315, 0.0
          %334 = vst.msk [vmem:[#allocation2 + $0x90] sm:$0xff] %vm315, 0.0
          %335 = vst.msk [vmem:[#allocation2 + $0x98] sm:$0xff] %vm315, 0.0
          %336 = vst.msk [vmem:[#allocation2 + $0xa0] sm:$0xff] %vm315, 0.0
          %337 = vst.msk [vmem:[#allocation2 + $0xa8] sm:$0xff] %vm315, 0.0
          %338 = vst.msk [vmem:[#allocation2 + $0xb0] sm:$0xff] %vm315, 0.0
          %339 = vst.msk [vmem:[#allocation2 + $0xb8] sm:$0xff] %vm315, 0.0
          %340 = vst.msk [vmem:[#allocation2 + $0xc0] sm:$0xff] %vm315, 0.0
          %341 = vst.msk [vmem:[#allocation2 + $0xc8] sm:$0xff] %vm315, 0.0
          %342 = vst.msk [vmem:[#allocation2 + $0xd0] sm:$0xff] %vm315, 0.0
          %343 = vst.msk [vmem:[#allocation2 + $0xd8] sm:$0xff] %vm315, 0.0
          %344 = vst.msk [vmem:[#allocation2 + $0xe0] sm:$0xff] %vm315, 0.0
          %345 = vst.msk [vmem:[#allocation2 + $0xe8] sm:$0xff] %vm315, 0.0
          %346 = vst.msk [vmem:[#allocation2 + $0xf0] sm:$0xff] %vm315, 0.0
          %347 = vst.msk [vmem:[#allocation2 + $0xf8] sm:$0xff] %vm315, 0.0
        $region32: #{tpu_custom_call.1} parent=27 // pred_fallthru
          _
        %v348 = vld [vmem:[#allocation2] sm:$0xff]
        %v349 = vld [vmem:[#allocation2 + $0x8] sm:$0xff]
        %v350 = vld [vmem:[#allocation2 + $0x10] sm:$0xff]
        %v351 = vld [vmem:[#allocation2 + $0x18] sm:$0xff]
        %v352 = vld [vmem:[#allocation2 + $0x20] sm:$0xff]
        %v353 = vld [vmem:[#allocation2 + $0x28] sm:$0xff]
        %v354 = vld [vmem:[#allocation2 + $0x30] sm:$0xff]
        %v355 = vld [vmem:[#allocation2 + $0x38] sm:$0xff]
        %v356 = vld [vmem:[#allocation2 + $0x40] sm:$0xff]
        %v357 = vld [vmem:[#allocation2 + $0x48] sm:$0xff]
        %v358 = vld [vmem:[#allocation2 + $0x50] sm:$0xff]
        %v359 = vld [vmem:[#allocation2 + $0x58] sm:$0xff]
        %v360 = vld [vmem:[#allocation2 + $0x60] sm:$0xff]
        %v361 = vld [vmem:[#allocation2 + $0x68] sm:$0xff]
        %v362 = vld [vmem:[#allocation2 + $0x70] sm:$0xff]
        %v363 = vld [vmem:[#allocation2 + $0x78] sm:$0xff]
        %v364 = vld [vmem:[#allocation2 + $0x80] sm:$0xff]
        %v365 = vld [vmem:[#allocation2 + $0x88] sm:$0xff]
        %v366 = vld [vmem:[#allocation2 + $0x90] sm:$0xff]
        %v367 = vld [vmem:[#allocation2 + $0x98] sm:$0xff]
        %v368 = vld [vmem:[#allocation2 + $0xa0] sm:$0xff]
        %v369 = vld [vmem:[#allocation2 + $0xa8] sm:$0xff]
        %v370 = vld [vmem:[#allocation2 + $0xb0] sm:$0xff]
        %v371 = vld [vmem:[#allocation2 + $0xb8] sm:$0xff]
        %v372 = vld [vmem:[#allocation2 + $0xc0] sm:$0xff]
        %v373 = vld [vmem:[#allocation2 + $0xc8] sm:$0xff]
        %v374 = vld [vmem:[#allocation2 + $0xd0] sm:$0xff]
        %v375 = vld [vmem:[#allocation2 + $0xd8] sm:$0xff]
        %v376 = vld [vmem:[#allocation2 + $0xe0] sm:$0xff]
        %v377 = vld [vmem:[#allocation2 + $0xe8] sm:$0xff]
        %v378 = vld [vmem:[#allocation2 + $0xf0] sm:$0xff]
        %v379 = vld [vmem:[#allocation2 + $0xf8] sm:$0xff]
        %v380 = vld [vmem:[%s284] sm:$0xf]
        %v381 = vld [vmem:[%s284 + $0x4] sm:$0xf]
        %v382 = vld [vmem:[%s284 + $0x8] sm:$0xf]
        %v383 = vld [vmem:[%s284 + $0xc] sm:$0xf]
        %v384 = vld [vmem:[%s284 + $0x10] sm:$0xf]
        %v385 = vld [vmem:[%s284 + $0x14] sm:$0xf]
        %v386 = vld [vmem:[%s284 + $0x18] sm:$0xf]
        %v387 = vld [vmem:[%s284 + $0x1c] sm:$0xf]
        %v388 = vld [vmem:[%s284 + $0x20] sm:$0xf]
        %v389 = vld [vmem:[%s284 + $0x24] sm:$0xf]
        %v390 = vld [vmem:[%s284 + $0x28] sm:$0xf]
        %v391 = vld [vmem:[%s284 + $0x2c] sm:$0xf]
        %v392 = vld [vmem:[%s284 + $0x30] sm:$0xf]
        %v393 = vld [vmem:[%s284 + $0x34] sm:$0xf]
        %v394 = vld [vmem:[%s284 + $0x38] sm:$0xf]
        %v395 = vld [vmem:[%s284 + $0x3c] sm:$0xf]
        %v396 = vld [vmem:[%s284 + $0x40] sm:$0xf]
        %v397 = vld [vmem:[%s284 + $0x44] sm:$0xf]
        %v398 = vld [vmem:[%s284 + $0x48] sm:$0xf]
        %v399 = vld [vmem:[%s284 + $0x4c] sm:$0xf]
        %v400 = vld [vmem:[%s284 + $0x50] sm:$0xf]
        %v401 = vld [vmem:[%s284 + $0x54] sm:$0xf]
        %v402 = vld [vmem:[%s284 + $0x58] sm:$0xf]
        %v403 = vld [vmem:[%s284 + $0x5c] sm:$0xf]
        %v404 = vld [vmem:[%s284 + $0x60] sm:$0xf]
        %v405 = vld [vmem:[%s284 + $0x64] sm:$0xf]
        %v406 = vld [vmem:[%s284 + $0x68] sm:$0xf]
        %v407 = vld [vmem:[%s284 + $0x6c] sm:$0xf]
        %v408 = vld [vmem:[%s284 + $0x70] sm:$0xf]
        %v409 = vld [vmem:[%s284 + $0x74] sm:$0xf]
        %v410 = vld [vmem:[%s284 + $0x78] sm:$0xf]
        %v411 = vld [vmem:[%s284 + $0x7c] sm:$0xf]
        %v412 = vld [vmem:[%s294] sm:$0xf]
        %v413 = vld [vmem:[%s294 + $0x4] sm:$0xf]
        %v414 = vld [vmem:[%s294 + $0x8] sm:$0xf]
        %v415 = vld [vmem:[%s294 + $0xc] sm:$0xf]
        %v416 = vld [vmem:[%s294 + $0x10] sm:$0x3]
        %v449 = vunpack.c.l.b16 %v380
        %v450 = vunpack.c.l.b16 %v381
        %v451 = vunpack.c.l.b16 %v382
        %v452 = vunpack.c.l.b16 %v383
        %v453 = vunpack.c.l.b16 %v384
        %v454 = vunpack.c.l.b16 %v385
        %v455 = vunpack.c.l.b16 %v386
        %v456 = vunpack.c.l.b16 %v387
        %v457 = vunpack.c.l.b16 %v388
        %v458 = vunpack.c.l.b16 %v389
        %v459 = vunpack.c.l.b16 %v390
        %v460 = vunpack.c.l.b16 %v391
        %v461 = vunpack.c.l.b16 %v392
        %v462 = vunpack.c.l.b16 %v393
        %v463 = vunpack.c.l.b16 %v394
        %v464 = vunpack.c.l.b16 %v395
        %v465 = vunpack.c.l.b16 %v396
        %v466 = vunpack.c.l.b16 %v397
        %v467 = vunpack.c.l.b16 %v398
        %v468 = vunpack.c.l.b16 %v399
        %v469 = vunpack.c.l.b16 %v400
        %v470 = vunpack.c.l.b16 %v401
        %v471 = vunpack.c.l.b16 %v402
        %v472 = vunpack.c.l.b16 %v403
        %v473 = vunpack.c.l.b16 %v404
        %v474 = vunpack.c.l.b16 %v405
        %v475 = vunpack.c.l.b16 %v406
        %v476 = vunpack.c.l.b16 %v407
        %v477 = vunpack.c.l.b16 %v408
        %v478 = vunpack.c.l.b16 %v409
        %v479 = vunpack.c.l.b16 %v410
        %v480 = vunpack.c.l.b16 %v411
        %v481 = vpack.c.b16 %v450, %v449
        %v482 = vpack.c.b16 %v452, %v451
        %v483 = vpack.c.b16 %v454, %v453
        %v484 = vpack.c.b16 %v456, %v455
        %v485 = vpack.c.b16 %v458, %v457
        %v486 = vpack.c.b16 %v460, %v459
        %v487 = vpack.c.b16 %v462, %v461
        %v488 = vpack.c.b16 %v464, %v463
        %v489 = vpack.c.b16 %v466, %v465
        %v490 = vpack.c.b16 %v468, %v467
        %v491 = vpack.c.b16 %v470, %v469
        %v492 = vpack.c.b16 %v472, %v471
        %v493 = vpack.c.b16 %v474, %v473
        %v494 = vpack.c.b16 %v476, %v475
        %v495 = vpack.c.b16 %v478, %v477
        %v496 = vpack.c.b16 %v480, %v479
        %v502 = vunpack.c.l.b16 %v412
        %v503 = vunpack.c.l.b16 %v413
        %v504 = vunpack.c.l.b16 %v414
        %v505 = vunpack.c.l.b16 %v415
        %v506 = vunpack.c.l.b16 %v416
        %v507 = vpack.c.b16 %v503, %v502
        %v508 = vpack.c.b16 %v505, %v504
        %v509 = vpack.c.b16 %v506, %v506
        %vm512 = vcmask 293888
        %v514 = vsel %vm512, %v481, 0
        %v517 = vsel %vm512, %v482, 0
        %v520 = vsel %vm512, %v483, 0
        %v523 = vsel %vm512, %v484, 0
        %v526 = vsel %vm512, %v485, 0
        %v529 = vsel %vm512, %v486, 0
        %v532 = vsel %vm512, %v487, 0
        %v535 = vsel %vm512, %v488, 0
        %v538 = vsel %vm512, %v489, 0
        %v541 = vsel %vm512, %v490, 0
        %v544 = vsel %vm512, %v491, 0
        %v547 = vsel %vm512, %v492, 0
        %v550 = vsel %vm512, %v493, 0
        %v553 = vsel %vm512, %v494, 0
        %v556 = vsel %vm512, %v495, 0
        %v559 = vsel %vm512, %v496, 0
        %vm561 = vcmask 1041408
        %v563 = vsel %vm561, %v509, 0
        %565 = vmatpush.bf16.msra.mxu0 0
        %566 = vmatpush.bf16.msra.mxu0 0
        %567 = vmatpush.bf16.msra.mxu0 0
        %568 = vmatpush.bf16.msra.mxu0 0
        %569 = vmatpush.bf16.msra.mxu0 0
        %570 = vmatpush.bf16.msra.mxu0 %v563
        %571 = vmatpush.bf16.msra.mxu0 %v508
        %572 = vmatpush.bf16.msra.mxu0 %v507
        %573 = vmatmul.bf16.gmra.mxu0 %v514
        %v574 = vpop.f32.mrf.mxu0
        %v575 = vadd.f32 0.0, %v574
        %v576 = vpop.f32.mrf.mxu0
        %v577 = vadd.f32 0.0, %v576
        %578 = vmatmul.bf16.gmra.mxu0 %v517
        %v579 = vpop.f32.mrf.mxu0
        %v580 = vadd.f32 0.0, %v579
        %v581 = vpop.f32.mrf.mxu0
        %v582 = vadd.f32 0.0, %v581
        %583 = vmatmul.bf16.gmra.mxu0 %v520
        %v584 = vpop.f32.mrf.mxu0
        %v585 = vadd.f32 0.0, %v584
        %v586 = vpop.f32.mrf.mxu0
        %v587 = vadd.f32 0.0, %v586
        %588 = vmatmul.bf16.gmra.mxu0 %v523
        %v589 = vpop.f32.mrf.mxu0
        %v590 = vadd.f32 0.0, %v589
        %v591 = vpop.f32.mrf.mxu0
        %v592 = vadd.f32 0.0, %v591
        %593 = vmatmul.bf16.gmra.mxu0 %v526
        %v594 = vpop.f32.mrf.mxu0
        %v595 = vadd.f32 0.0, %v594
        %v596 = vpop.f32.mrf.mxu0
        %v597 = vadd.f32 0.0, %v596
        %598 = vmatmul.bf16.gmra.mxu0 %v529
        %v599 = vpop.f32.mrf.mxu0
        %v600 = vadd.f32 0.0, %v599
        %v601 = vpop.f32.mrf.mxu0
        %v602 = vadd.f32 0.0, %v601
        %603 = vmatmul.bf16.gmra.mxu0 %v532
        %v604 = vpop.f32.mrf.mxu0
        %v605 = vadd.f32 0.0, %v604
        %v606 = vpop.f32.mrf.mxu0
        %v607 = vadd.f32 0.0, %v606
        %608 = vmatmul.bf16.gmra.mxu0 %v535
        %v609 = vpop.f32.mrf.mxu0
        %v610 = vadd.f32 0.0, %v609
        %v611 = vpop.f32.mrf.mxu0
        %v612 = vadd.f32 0.0, %v611
        %613 = vmatmul.bf16.gmra.mxu0 %v538
        %v614 = vpop.f32.mrf.mxu0
        %v615 = vadd.f32 0.0, %v614
        %v616 = vpop.f32.mrf.mxu0
        %v617 = vadd.f32 0.0, %v616
        %618 = vmatmul.bf16.gmra.mxu0 %v541
        %v619 = vpop.f32.mrf.mxu0
        %v620 = vadd.f32 0.0, %v619
        %v621 = vpop.f32.mrf.mxu0
        %v622 = vadd.f32 0.0, %v621
        %623 = vmatmul.bf16.gmra.mxu0 %v544
        %v624 = vpop.f32.mrf.mxu0
        %v625 = vadd.f32 0.0, %v624
        %v626 = vpop.f32.mrf.mxu0
        %v627 = vadd.f32 0.0, %v626
        %628 = vmatmul.bf16.gmra.mxu0 %v547
        %v629 = vpop.f32.mrf.mxu0
        %v630 = vadd.f32 0.0, %v629
        %v631 = vpop.f32.mrf.mxu0
        %v632 = vadd.f32 0.0, %v631
        %633 = vmatmul.bf16.gmra.mxu0 %v550
        %v634 = vpop.f32.mrf.mxu0
        %v635 = vadd.f32 0.0, %v634
        %v636 = vpop.f32.mrf.mxu0
        %v637 = vadd.f32 0.0, %v636
        %638 = vmatmul.bf16.gmra.mxu0 %v553
        %v639 = vpop.f32.mrf.mxu0
        %v640 = vadd.f32 0.0, %v639
        %v641 = vpop.f32.mrf.mxu0
        %v642 = vadd.f32 0.0, %v641
        %643 = vmatmul.bf16.gmra.mxu0 %v556
        %v644 = vpop.f32.mrf.mxu0
        %v645 = vadd.f32 0.0, %v644
        %v646 = vpop.f32.mrf.mxu0
        %v647 = vadd.f32 0.0, %v646
        %648 = vmatmul.bf16.gmra.mxu0 %v559
        %v649 = vpop.f32.mrf.mxu0
        %v650 = vadd.f32 0.0, %v649
        %v651 = vpop.f32.mrf.mxu0
        %v652 = vadd.f32 0.0, %v651
        %653 = vdwg.mxu0
        %v654 = vadd.f32 %v348, %v575
        %v655 = vadd.f32 %v349, %v577
        %v656 = vadd.f32 %v350, %v580
        %v657 = vadd.f32 %v351, %v582
        %v658 = vadd.f32 %v352, %v585
        %v659 = vadd.f32 %v353, %v587
        %v660 = vadd.f32 %v354, %v590
        %v661 = vadd.f32 %v355, %v592
        %v662 = vadd.f32 %v356, %v595
        %v663 = vadd.f32 %v357, %v597
        %v664 = vadd.f32 %v358, %v600
        %v665 = vadd.f32 %v359, %v602
        %v666 = vadd.f32 %v360, %v605
        %v667 = vadd.f32 %v361, %v607
        %v668 = vadd.f32 %v362, %v610
        %v669 = vadd.f32 %v363, %v612
        %v670 = vadd.f32 %v364, %v615
        %v671 = vadd.f32 %v365, %v617
        %v672 = vadd.f32 %v366, %v620
        %v673 = vadd.f32 %v367, %v622
        %v674 = vadd.f32 %v368, %v625
        %v675 = vadd.f32 %v369, %v627
        %v676 = vadd.f32 %v370, %v630
        %v677 = vadd.f32 %v371, %v632
        %v678 = vadd.f32 %v372, %v635
        %v679 = vadd.f32 %v373, %v637
        %v680 = vadd.f32 %v374, %v640
        %v681 = vadd.f32 %v375, %v642
        %v682 = vadd.f32 %v376, %v645
        %v683 = vadd.f32 %v377, %v647
        %v684 = vadd.f32 %v378, %v650
        %v685 = vadd.f32 %v379, %v652
        %vm686 = vcmask 64512
        %687 = vst.msk [vmem:[#allocation2] sm:$0xff] %vm686, %v654
        %688 = vst.msk [vmem:[#allocation2 + $0x8] sm:$0xff] %vm686, %v655
        %689 = vst.msk [vmem:[#allocation2 + $0x10] sm:$0xff] %vm686, %v656
        %690 = vst.msk [vmem:[#allocation2 + $0x18] sm:$0xff] %vm686, %v657
        %691 = vst.msk [vmem:[#allocation2 + $0x20] sm:$0xff] %vm686, %v658
        %692 = vst.msk [vmem:[#allocation2 + $0x28] sm:$0xff] %vm686, %v659
        %693 = vst.msk [vmem:[#allocation2 + $0x30] sm:$0xff] %vm686, %v660
        %694 = vst.msk [vmem:[#allocation2 + $0x38] sm:$0xff] %vm686, %v661
        %695 = vst.msk [vmem:[#allocation2 + $0x40] sm:$0xff] %vm686, %v662
        %696 = vst.msk [vmem:[#allocation2 + $0x48] sm:$0xff] %vm686, %v663
        %697 = vst.msk [vmem:[#allocation2 + $0x50] sm:$0xff] %vm686, %v664
        %698 = vst.msk [vmem:[#allocation2 + $0x58] sm:$0xff] %vm686, %v665
        %699 = vst.msk [vmem:[#allocation2 + $0x60] sm:$0xff] %vm686, %v666
        %700 = vst.msk [vmem:[#allocation2 + $0x68] sm:$0xff] %vm686, %v667
        %701 = vst.msk [vmem:[#allocation2 + $0x70] sm:$0xff] %vm686, %v668
        %702 = vst.msk [vmem:[#allocation2 + $0x78] sm:$0xff] %vm686, %v669
        %703 = vst.msk [vmem:[#allocation2 + $0x80] sm:$0xff] %vm686, %v670
        %704 = vst.msk [vmem:[#allocation2 + $0x88] sm:$0xff] %vm686, %v671
        %705 = vst.msk [vmem:[#allocation2 + $0x90] sm:$0xff] %vm686, %v672
        %706 = vst.msk [vmem:[#allocation2 + $0x98] sm:$0xff] %vm686, %v673
        %707 = vst.msk [vmem:[#allocation2 + $0xa0] sm:$0xff] %vm686, %v674
        %708 = vst.msk [vmem:[#allocation2 + $0xa8] sm:$0xff] %vm686, %v675
        %709 = vst.msk [vmem:[#allocation2 + $0xb0] sm:$0xff] %vm686, %v676
        %710 = vst.msk [vmem:[#allocation2 + $0xb8] sm:$0xff] %vm686, %v677
        %711 = vst.msk [vmem:[#allocation2 + $0xc0] sm:$0xff] %vm686, %v678
        %712 = vst.msk [vmem:[#allocation2 + $0xc8] sm:$0xff] %vm686, %v679
        %713 = vst.msk [vmem:[#allocation2 + $0xd0] sm:$0xff] %vm686, %v680
        %714 = vst.msk [vmem:[#allocation2 + $0xd8] sm:$0xff] %vm686, %v681
        %715 = vst.msk [vmem:[#allocation2 + $0xe0] sm:$0xff] %vm686, %v682
        %716 = vst.msk [vmem:[#allocation2 + $0xe8] sm:$0xff] %vm686, %v683
        %717 = vst.msk [vmem:[#allocation2 + $0xf0] sm:$0xff] %vm686, %v684
        %718 = vst.msk [vmem:[#allocation2 + $0xf8] sm:$0xff] %vm686, %v685
        // Predicated region
        $region33: #{tpu_custom_call.1} parent=27 // pred_check
          %p719 = pneg %p311
        $region34: #{tpu_custom_call.1} parent=27 // pred_check_branch
          %721 = sbr.rel (%p719) target = $region36
        $region35: #{tpu_custom_call.1} parent=27 // pred_region
          %v722 = vld [vmem:[#allocation2] sm:$0xff]
          %v723 = vld [vmem:[#allocation2 + $0x8] sm:$0xff]
          %v724 = vld [vmem:[#allocation2 + $0x10] sm:$0xff]
          %v725 = vld [vmem:[#allocation2 + $0x18] sm:$0xff]
          %v726 = vld [vmem:[#allocation2 + $0x20] sm:$0xff]
          %v727 = vld [vmem:[#allocation2 + $0x28] sm:$0xff]
          %v728 = vld [vmem:[#allocation2 + $0x30] sm:$0xff]
          %v729 = vld [vmem:[#allocation2 + $0x38] sm:$0xff]
          %v730 = vld [vmem:[#allocation2 + $0x40] sm:$0xff]
          %v731 = vld [vmem:[#allocation2 + $0x48] sm:$0xff]
          %v732 = vld [vmem:[#allocation2 + $0x50] sm:$0xff]
          %v733 = vld [vmem:[#allocation2 + $0x58] sm:$0xff]
          %v734 = vld [vmem:[#allocation2 + $0x60] sm:$0xff]
          %v735 = vld [vmem:[#allocation2 + $0x68] sm:$0xff]
          %v736 = vld [vmem:[#allocation2 + $0x70] sm:$0xff]
          %v737 = vld [vmem:[#allocation2 + $0x78] sm:$0xff]
          %v738 = vld [vmem:[#allocation2 + $0x80] sm:$0xff]
          %v739 = vld [vmem:[#allocation2 + $0x88] sm:$0xff]
          %v740 = vld [vmem:[#allocation2 + $0x90] sm:$0xff]
          %v741 = vld [vmem:[#allocation2 + $0x98] sm:$0xff]
          %v742 = vld [vmem:[#allocation2 + $0xa0] sm:$0xff]
          %v743 = vld [vmem:[#allocation2 + $0xa8] sm:$0xff]
          %v744 = vld [vmem:[#allocation2 + $0xb0] sm:$0xff]
          %v745 = vld [vmem:[#allocation2 + $0xb8] sm:$0xff]
          %v746 = vld [vmem:[#allocation2 + $0xc0] sm:$0xff]
          %v747 = vld [vmem:[#allocation2 + $0xc8] sm:$0xff]
          %v748 = vld [vmem:[#allocation2 + $0xd0] sm:$0xff]
          %v749 = vld [vmem:[#allocation2 + $0xd8] sm:$0xff]
          %v750 = vld [vmem:[#allocation2 + $0xe0] sm:$0xff]
          %v751 = vld [vmem:[#allocation2 + $0xe8] sm:$0xff]
          %v752 = vld [vmem:[#allocation2 + $0xf0] sm:$0xff]
          %v753 = vld [vmem:[#allocation2 + $0xf8] sm:$0xff]
          %v754 = vpack.c.bf16 %v722, %v722
          %v755 = vpack.c.bf16 %v723, %v723
          %v756 = vpack.c.bf16 %v724, %v724
          %v757 = vpack.c.bf16 %v725, %v725
          %v758 = vpack.c.bf16 %v726, %v726
          %v759 = vpack.c.bf16 %v727, %v727
          %v760 = vpack.c.bf16 %v728, %v728
          %v761 = vpack.c.bf16 %v729, %v729
          %v762 = vpack.c.bf16 %v730, %v730
          %v763 = vpack.c.bf16 %v731, %v731
          %v764 = vpack.c.bf16 %v732, %v732
          %v765 = vpack.c.bf16 %v733, %v733
          %v766 = vpack.c.bf16 %v734, %v734
          %v767 = vpack.c.bf16 %v735, %v735
          %v768 = vpack.c.bf16 %v736, %v736
          %v769 = vpack.c.bf16 %v737, %v737
          %v770 = vpack.c.bf16 %v738, %v738
          %v771 = vpack.c.bf16 %v739, %v739
          %v772 = vpack.c.bf16 %v740, %v740
          %v773 = vpack.c.bf16 %v741, %v741
          %v774 = vpack.c.bf16 %v742, %v742
          %v775 = vpack.c.bf16 %v743, %v743
          %v776 = vpack.c.bf16 %v744, %v744
          %v777 = vpack.c.bf16 %v745, %v745
          %v778 = vpack.c.bf16 %v746, %v746
          %v779 = vpack.c.bf16 %v747, %v747
          %v780 = vpack.c.bf16 %v748, %v748
          %v781 = vpack.c.bf16 %v749, %v749
          %v782 = vpack.c.bf16 %v750, %v750
          %v783 = vpack.c.bf16 %v751, %v751
          %v784 = vpack.c.bf16 %v752, %v752
          %v785 = vpack.c.bf16 %v753, %v753
          %vm786 = vcmask 60416
          %787 = vst.msk [vmem:[%s308] sm:$0xf] %vm786, %v754
          %788 = vst.msk [vmem:[%s308 + $0x4] sm:$0xf] %vm786, %v755
          %789 = vst.msk [vmem:[%s308 + $0x8] sm:$0xf] %vm786, %v756
          %790 = vst.msk [vmem:[%s308 + $0xc] sm:$0xf] %vm786, %v757
          %791 = vst.msk [vmem:[%s308 + $0x10] sm:$0xf] %vm786, %v758
          %792 = vst.msk [vmem:[%s308 + $0x14] sm:$0xf] %vm786, %v759
          %793 = vst.msk [vmem:[%s308 + $0x18] sm:$0xf] %vm786, %v760
          %794 = vst.msk [vmem:[%s308 + $0x1c] sm:$0xf] %vm786, %v761
          %795 = vst.msk [vmem:[%s308 + $0x20] sm:$0xf] %vm786, %v762
          %796 = vst.msk [vmem:[%s308 + $0x24] sm:$0xf] %vm786, %v763
          %797 = vst.msk [vmem:[%s308 + $0x28] sm:$0xf] %vm786, %v764
          %798 = vst.msk [vmem:[%s308 + $0x2c] sm:$0xf] %vm786, %v765
          %799 = vst.msk [vmem:[%s308 + $0x30] sm:$0xf] %vm786, %v766
          %800 = vst.msk [vmem:[%s308 + $0x34] sm:$0xf] %vm786, %v767
          %801 = vst.msk [vmem:[%s308 + $0x38] sm:$0xf] %vm786, %v768
          %802 = vst.msk [vmem:[%s308 + $0x3c] sm:$0xf] %vm786, %v769
          %803 = vst.msk [vmem:[%s308 + $0x40] sm:$0xf] %vm786, %v770
          %804 = vst.msk [vmem:[%s308 + $0x44] sm:$0xf] %vm786, %v771
          %805 = vst.msk [vmem:[%s308 + $0x48] sm:$0xf] %vm786, %v772
          %806 = vst.msk [vmem:[%s308 + $0x4c] sm:$0xf] %vm786, %v773
          %807 = vst.msk [vmem:[%s308 + $0x50] sm:$0xf] %vm786, %v774
          %808 = vst.msk [vmem:[%s308 + $0x54] sm:$0xf] %vm786, %v775
          %809 = vst.msk [vmem:[%s308 + $0x58] sm:$0xf] %vm786, %v776
          %810 = vst.msk [vmem:[%s308 + $0x5c] sm:$0xf] %vm786, %v777
          %811 = vst.msk [vmem:[%s308 + $0x60] sm:$0xf] %vm786, %v778
          %812 = vst.msk [vmem:[%s308 + $0x64] sm:$0xf] %vm786, %v779
          %813 = vst.msk [vmem:[%s308 + $0x68] sm:$0xf] %vm786, %v780
          %814 = vst.msk [vmem:[%s308 + $0x6c] sm:$0xf] %vm786, %v781
          %815 = vst.msk [vmem:[%s308 + $0x70] sm:$0xf] %vm786, %v782
          %816 = vst.msk [vmem:[%s308 + $0x74] sm:$0xf] %vm786, %v783
          %817 = vst.msk [vmem:[%s308 + $0x78] sm:$0xf] %vm786, %v784
          %818 = vst.msk [vmem:[%s308 + $0x7c] sm:$0xf] %vm786, %v785
          %v819 = vsel %vm686, %v722, 0.0
          %v820 = vsel %vm686, %v723, 0.0
          %v821 = vadd.f32 %v819, %v820
          %v822 = vsel %vm686, %v724, 0.0
          %v823 = vadd.f32 %v821, %v822
          %v824 = vsel %vm686, %v725, 0.0
          %v825 = vadd.f32 %v823, %v824
          %v826 = vsel %vm686, %v726, 0.0
          %v827 = vadd.f32 %v825, %v826
          %v828 = vsel %vm686, %v727, 0.0
          %v829 = vadd.f32 %v827, %v828
          %v830 = vsel %vm686, %v728, 0.0
          %v831 = vadd.f32 %v829, %v830
          %v832 = vsel %vm686, %v729, 0.0
          %v833 = vadd.f32 %v831, %v832
          %v834 = vsel %vm686, %v730, 0.0
          %v835 = vadd.f32 %v833, %v834
          %v836 = vsel %vm686, %v731, 0.0
          %v837 = vadd.f32 %v835, %v836
          %v838 = vsel %vm686, %v732, 0.0
          %v839 = vadd.f32 %v837, %v838
          %v840 = vsel %vm686, %v733, 0.0
          %v841 = vadd.f32 %v839, %v840
          %v842 = vsel %vm686, %v734, 0.0
          %v843 = vadd.f32 %v841, %v842
          %v844 = vsel %vm686, %v735, 0.0
          %v845 = vadd.f32 %v843, %v844
          %v846 = vsel %vm686, %v736, 0.0
          %v847 = vadd.f32 %v845, %v846
          %v848 = vsel %vm686, %v737, 0.0
          %v849 = vadd.f32 %v847, %v848
          %v850 = vsel %vm686, %v738, 0.0
          %v851 = vadd.f32 %v849, %v850
          %v852 = vsel %vm686, %v739, 0.0
          %v853 = vadd.f32 %v851, %v852
          %v854 = vsel %vm686, %v740, 0.0
          %v855 = vadd.f32 %v853, %v854
          %v856 = vsel %vm686, %v741, 0.0
          %v857 = vadd.f32 %v855, %v856
          %v858 = vsel %vm686, %v742, 0.0
          %v859 = vadd.f32 %v857, %v858
          %v860 = vsel %vm686, %v743, 0.0
          %v861 = vadd.f32 %v859, %v860
          %v862 = vsel %vm686, %v744, 0.0
          %v863 = vadd.f32 %v861, %v862
          %v864 = vsel %vm686, %v745, 0.0
          %v865 = vadd.f32 %v863, %v864
          %v866 = vsel %vm686, %v746, 0.0
          %v867 = vadd.f32 %v865, %v866
          %v868 = vsel %vm686, %v747, 0.0
          %v869 = vadd.f32 %v867, %v868
          %v870 = vsel %vm686, %v748, 0.0
          %v871 = vadd.f32 %v869, %v870
          %v872 = vsel %vm686, %v749, 0.0
          %v873 = vadd.f32 %v871, %v872
          %v874 = vsel %vm686, %v750, 0.0
          %v875 = vadd.f32 %v873, %v874
          %v876 = vsel %vm686, %v751, 0.0
          %v877 = vadd.f32 %v875, %v876
          %v878 = vsel %vm686, %v752, 0.0
          %v879 = vadd.f32 %v877, %v878
          %v880 = vsel %vm686, %v753, 0.0
          %v881 = vadd.f32 %v879, %v880
          %v882 = vrot.slane %v881, 4
          %v883 = vadd.f32 %v881, %v882
          %v884 = vrot.slane %v883, 2
          %v885 = vadd.f32 %v883, %v884
          %v886 = vrot.slane %v885, 1
          %v887 = vadd.f32 %v885, %v886
          %vm888 = vcmask 57344
          %889 = vst.msk [vmem:[%s268] sm:$0x1] %vm888, %v887
          %v890 = vmul.f32 %v722, %v722
          %v891 = vmul.f32 %v723, %v723
          %v892 = vmul.f32 %v724, %v724
          %v893 = vmul.f32 %v725, %v725
          %v894 = vmul.f32 %v726, %v726
          %v895 = vmul.f32 %v727, %v727
          %v896 = vmul.f32 %v728, %v728
          %v897 = vmul.f32 %v729, %v729
          %v898 = vmul.f32 %v730, %v730
          %v899 = vmul.f32 %v731, %v731
          %v900 = vmul.f32 %v732, %v732
          %v901 = vmul.f32 %v733, %v733
          %v902 = vmul.f32 %v734, %v734
          %v903 = vmul.f32 %v735, %v735
          %v904 = vmul.f32 %v736, %v736
          %v905 = vmul.f32 %v737, %v737
          %v906 = vmul.f32 %v738, %v738
          %v907 = vmul.f32 %v739, %v739
          %v908 = vmul.f32 %v740, %v740
          %v909 = vmul.f32 %v741, %v741
          %v910 = vmul.f32 %v742, %v742
          %v911 = vmul.f32 %v743, %v743
          %v912 = vmul.f32 %v744, %v744
          %v913 = vmul.f32 %v745, %v745
          %v914 = vmul.f32 %v746, %v746
          %v915 = vmul.f32 %v747, %v747
          %v916 = vmul.f32 %v748, %v748
          %v917 = vmul.f32 %v749, %v749
          %v918 = vmul.f32 %v750, %v750
          %v919 = vmul.f32 %v751, %v751
          %v920 = vmul.f32 %v752, %v752
          %v921 = vmul.f32 %v753, %v753
          %v922 = vsel %vm686, %v890, 0.0
          %v923 = vsel %vm686, %v891, 0.0
          %v924 = vadd.f32 %v922, %v923
          %v925 = vsel %vm686, %v892, 0.0
          %v926 = vadd.f32 %v924, %v925
          %v927 = vsel %vm686, %v893, 0.0
          %v928 = vadd.f32 %v926, %v927
          %v929 = vsel %vm686, %v894, 0.0
          %v930 = vadd.f32 %v928, %v929
          %v931 = vsel %vm686, %v895, 0.0
          %v932 = vadd.f32 %v930, %v931
          %v933 = vsel %vm686, %v896, 0.0
          %v934 = vadd.f32 %v932, %v933
          %v935 = vsel %vm686, %v897, 0.0
          %v936 = vadd.f32 %v934, %v935
          %v937 = vsel %vm686, %v898, 0.0
          %v938 = vadd.f32 %v936, %v937
          %v939 = vsel %vm686, %v899, 0.0
          %v940 = vadd.f32 %v938, %v939
          %v941 = vsel %vm686, %v900, 0.0
          %v942 = vadd.f32 %v940, %v941
          %v943 = vsel %vm686, %v901, 0.0
          %v944 = vadd.f32 %v942, %v943
          %v945 = vsel %vm686, %v902, 0.0
          %v946 = vadd.f32 %v944, %v945
          %v947 = vsel %vm686, %v903, 0.0
          %v948 = vadd.f32 %v946, %v947
          %v949 = vsel %vm686, %v904, 0.0
          %v950 = vadd.f32 %v948, %v949
          %v951 = vsel %vm686, %v905, 0.0
          %v952 = vadd.f32 %v950, %v951
          %v953 = vsel %vm686, %v906, 0.0
          %v954 = vadd.f32 %v952, %v953
          %v955 = vsel %vm686, %v907, 0.0
          %v956 = vadd.f32 %v954, %v955
          %v957 = vsel %vm686, %v908, 0.0
          %v958 = vadd.f32 %v956, %v957
          %v959 = vsel %vm686, %v909, 0.0
          %v960 = vadd.f32 %v958, %v959
          %v961 = vsel %vm686, %v910, 0.0
          %v962 = vadd.f32 %v960, %v961
          %v963 = vsel %vm686, %v911, 0.0
          %v964 = vadd.f32 %v962, %v963
          %v965 = vsel %vm686, %v912, 0.0
          %v966 = vadd.f32 %v964, %v965
          %v967 = vsel %vm686, %v913, 0.0
          %v968 = vadd.f32 %v966, %v967
          %v969 = vsel %vm686, %v914, 0.0
          %v970 = vadd.f32 %v968, %v969
          %v971 = vsel %vm686, %v915, 0.0
          %v972 = vadd.f32 %v970, %v971
          %v973 = vsel %vm686, %v916, 0.0
          %v974 = vadd.f32 %v972, %v973
          %v975 = vsel %vm686, %v917, 0.0
          %v976 = vadd.f32 %v974, %v975
          %v977 = vsel %vm686, %v918, 0.0
          %v978 = vadd.f32 %v976, %v977
          %v979 = vsel %vm686, %v919, 0.0
          %v980 = vadd.f32 %v978, %v979
          %v981 = vsel %vm686, %v920, 0.0
          %v982 = vadd.f32 %v980, %v981
          %v983 = vsel %vm686, %v921, 0.0
          %v984 = vadd.f32 %v982, %v983
          %v985 = vrot.slane %v984, 4
          %v986 = vadd.f32 %v984, %v985
          %v987 = vrot.slane %v986, 2
          %v988 = vadd.f32 %v986, %v987
          %v989 = vrot.slane %v988, 1
          %v990 = vadd.f32 %v988, %v989
          %991 = vst.msk [vmem:[%s268 + $0x1] sm:$0x1] %vm888, %v990
        $region36: #{tpu_custom_call.1} parent=27 // pred_fallthru
          _
        %s992 = smul.u32 32, %s26
        %p993 = scmp.lt.s32.totalorder %s24, 0
        %s994 = scalar_select %p993, %s24, 0
        %p995 = scmp.lt.s32.totalorder %s25, 1
        %s996 = scalar_select %p995, %s25, 1
        %p997 = scmp.lt.s32.totalorder %s992, 31
        %s998 = scalar_select %p997, %s992, 31
        %s999 = smul.addr %s996, 32
        %s1000 = sadd.s32 %s998, %s999
        %s1001 = smul.addr %s994, 64
        %s1002 = sadd.s32 %s1000, %s1001
        %s1003 = smul.addr %s1002, 4
        %s1004 = scalar_lea.vmem %s2, %s1003
        %s1005 = sand.u32 %s146, 1
        %s1006 = scalar_lea.sflag [#allocation4], %s1005
        %s1007 = sand.u32 %s146, 1
        %s1008 = smul.addr %s1007, 8
        %s1009 = scalar_lea.vmem [#allocation3], %s1008
        // Predicated region
        $region37: #{tpu_custom_call.1} parent=27 // pred_check
          %p1010 = pneg %p126
        $region38: #{tpu_custom_call.1} parent=27 // pred_check_branch
          %1012 = sbr.rel (%p1010) target = $region40
        $region39: #{tpu_custom_call.1} parent=27 // pred_region
          %s1013 = smul.u32 32, %s26
        $region40: #{tpu_custom_call.1} parent=27 // pred_fallthru
          _
        // Predicated region
        $region41: #{tpu_custom_call.1} parent=27 // pred_check
          %p1014 = pneg %p156
        $region42: #{tpu_custom_call.1} parent=27 // pred_check_branch
          %1016 = sbr.rel (%p1014) target = $region44
        $region43: #{tpu_custom_call.1} parent=27 // pred_region
          %1018 = vsyncadd %s1006, 0
          %s1019 = sadd.s32 %s26, %s25
          %s1020 = smul.addr %s24, 2
          %s1021 = sadd.s32 %s1019, %s1020
          %s1022 = smul.addr %s1021, 8
          %s1023 = scalar_lea.hbm %s3, %s1022
          %s1025 = sshll.u32 %s1009, 4
          %s1026 = int_to_ptr.vmem [resolvable:$true] %s1025
          %s1027 = sshll.u32 %s1023, 4
          %s1028 = int_to_ptr.hbm [resolvable:$true] %s1027
          %1030 = dma.vmem_to_hbm [thread:$0]  %s1026, 128, %s1028, %s1006
        $region44: #{tpu_custom_call.1} parent=27 // pred_fallthru
          _
      $region28: #{tpu_custom_call.1} parent=5 // pred_fallthru
        _
      %p1031 = scmp.le.s32.totalorder 2, %s13
      // Predicated region
      $region45: #{tpu_custom_call.1} parent=5 // pred_check
        %p1032 = pneg %p1031
      $region46: #{tpu_custom_call.1} parent=5 // pred_check_branch
        %1034 = sbr.rel (%p1032) target = $region48
      $region47: #{tpu_custom_call.1} parent=5 // pred_region
        %s1035 = ssub.s32 %s13, 2
        // Predicated region
        $region49: #{tpu_custom_call.1} parent=47 // pred_check
          %p1036 = pneg %p132
        $region50: #{tpu_custom_call.1} parent=47 // pred_check_branch
          %1038 = sbr.rel (%p1036) target = $region52
        $region51: #{tpu_custom_call.1} parent=47 // pred_region
          %s1039 = smul.u32 32, %s30
          %p1040 = scmp.lt.s32.totalorder %s28, 0
          %s1041 = scalar_select %p1040, %s28, 0
          %p1042 = scmp.lt.s32.totalorder %s29, 1
          %s1043 = scalar_select %p1042, %s29, 1
          %p1044 = scmp.lt.s32.totalorder %s1039, 31
          %s1045 = scalar_select %p1044, %s1039, 31
          %s1046 = smul.addr %s1043, 32
          %s1047 = sadd.s32 %s1045, %s1046
          %s1048 = smul.addr %s1041, 64
          %s1049 = sadd.s32 %s1047, %s1048
          %s1050 = smul.addr %s1049, 4
          %s1051 = scalar_lea.vmem %s2, %s1050
        $region52: #{tpu_custom_call.1} parent=47 // pred_fallthru
          _
        // Predicated region
        $region53: #{tpu_custom_call.1} parent=47 // pred_check
          %p1052 = pneg %p162
        $region54: #{tpu_custom_call.1} parent=47 // pred_check_branch
          %1054 = sbr.rel (%p1052) target = $region56
        $region55: #{tpu_custom_call.1} parent=47 // pred_region
          %s1055 = sand.u32 %s147, 1
          %s1056 = scalar_lea.sflag [#allocation4], %s1055
          %s1057 = sand.u32 %s147, 1
          %s1058 = smul.addr %s1057, 8
          %s1059 = scalar_lea.vmem [#allocation3], %s1058
          %1061 = dma.done %s1056, 128
        $region56: #{tpu_custom_call.1} parent=47 // pred_fallthru
          _
      $region48: #{tpu_custom_call.1} parent=5 // pred_fallthru
        _
    $region6: #{tpu_custom_call.1} parent=1 // loop_footer
      %s17 = sadd.s32 1, %s13
    $region7: #{tpu_custom_call.1} parent=1 // loop_footer_branch
      %12 = sbr.rel target = $region3
    $region8: #{tpu_custom_call.1} parent=1 // loop_exit
      _
    %1062 = vsyncpa [#allocation4], 1
    %s1063 = scalar_lea.sflag [#allocation4], 1
    %1064 = vsyncpa %s1063, 1

</llo_original>
